<compile_context>
chip_gen: v7x
topology: tpu7x:2x2x1
jax: 0.10.0
libtpu: 0.0.40
codegen_flags: <defaults>
</compile_context>

<pallas_src>
import functools

import jax
import jax.numpy as jnp
from jax.experimental import pallas as pl
from jax.experimental.pallas import tpu as pltpu


# ----------------------------------------------------------------------------- kernel

def _vmem_spec():
    return pl.BlockSpec(memory_space=pltpu.MemorySpace.VMEM)


def make_decoder_kernel(num_layers):
    """Builds the fused single-step decoder kernel for a static number of LSTM layers."""

    def kernel(*refs):
        # ---- unpack refs: inputs..., outputs...
        idx = 0
        ids_ref = refs[idx]; idx += 1          # (B, 1) int32
        emb_ref = refs[idx]; idx += 1          # (V, E)
        h0_ref = refs[idx]; idx += 1           # (L, B, H)
        c0_ref = refs[idx]; idx += 1           # (L, B, H)
        enc_ref = refs[idx]; idx += 1          # (B, S, H)
        w_refs, b_refs = [], []
        for _ in range(num_layers):
            w_refs.append(refs[idx]); idx += 1  # (In_l + H, 4H)
            b_refs.append(refs[idx]); idx += 1  # (1, 4H)
        wa_ref = refs[idx]; idx += 1           # (H, H)
        ba_ref = refs[idx]; idx += 1           # (1, H)
        wc_ref = refs[idx]; idx += 1           # (2H, H)
        bc_ref = refs[idx]; idx += 1           # (1, H)
        wo_ref = refs[idx]; idx += 1           # (H, V)
        bo_ref = refs[idx]; idx += 1           # (1, V)
        logits_ref = refs[idx]; idx += 1       # (B, V)
        h_out_ref = refs[idx]; idx += 1        # (L, B, H)
        c_out_ref = refs[idx]; idx += 1        # (L, B, H)

        B = ids_ref.shape[0]
        V = emb_ref.shape[0]
        H = h0_ref.shape[-1]

        # ---- embedding lookup as a one-hot MXU matmul (no dynamic VMEM indexing).
        ids = ids_ref[...]                                           # (B, 1) int32
        vocab_iota = jax.lax.broadcasted_iota(jnp.int32, (B, V), 1)  # (B, V)
        onehot = (ids == vocab_iota).astype(jnp.float32)             # (B, V)
        x = jnp.dot(onehot, emb_ref[...],
                    preferred_element_type=jnp.float32)              # (B, E)
        # embedding_dropout is identity (eval / dropout=0).

        # ---- LSTM: one time-step through num_layers layers (inter-layer dropout = id).
        for l in range(num_layers):
            h_prev = h0_ref[l]                                       # (B, H)
            c_prev = c0_ref[l]                                       # (B, H)
            xh = jnp.concatenate([x, h_prev], axis=1)                # (B, In_l + H)
            gates = (jnp.dot(xh, w_refs[l][...],
                             preferred_element_type=jnp.float32)
                     + b_refs[l][...])                               # (B, 4H)
            # PyTorch gate order: i, f, g, o.
            # At H=32, 4H=128 fills exactly one lane vreg; these slices are 32-lane
            # sub-selects.  At realistic H>=128 they become (8,128)-aligned and free.
            i = jax.nn.sigmoid(gates[:, 0 * H:1 * H])
            f = jax.nn.sigmoid(gates[:, 1 * H:2 * H])
            g = jnp.tanh(gates[:, 2 * H:3 * H])
            o = jax.nn.sigmoid(gates[:, 3 * H:4 * H])
            c_new = f * c_prev + i * g
            h_new = o * jnp.tanh(c_new)
            h_out_ref[l] = h_new
            c_out_ref[l] = c_new
            x = h_new

        rnn_out = x                                                  # (B, H)

        # ---- attention over encoder outputs (batch-first layout).
        enc = enc_ref[...]                                           # (B, S, H)
        Bq, S, Hd = enc.shape
        # ea = attn_w(enc): single 2-D MXU dot over (B*S, H) rows.
        ea = (jnp.dot(enc.reshape(Bq * S, Hd), wa_ref[...],
                      preferred_element_type=jnp.float32)
              + ba_ref[...]).reshape(Bq, S, Hd)                      # (B, S, H)
        # scores: VPU broadcast-multiply + lane reduce (no batched matvec).
        e = jnp.sum(ea * rnn_out[:, None, :], axis=-1)               # (B, S)
        attn = jax.nn.softmax(e, axis=-1)                            # (B, S)
        # context: VPU broadcast-multiply + sublane reduce.
        ctx = jnp.sum(attn[:, :, None] * enc, axis=1)                # (B, H)

        # ---- concat -> tanh -> output projection (single fused (B,2H)@(2H,H) dot).
        concat_in = jnp.concatenate([rnn_out, ctx], axis=1)          # (B, 2H)
        concat_out = jnp.tanh(
            jnp.dot(concat_in, wc_ref[...],
                    preferred_element_type=jnp.float32) + bc_ref[...])   # (B, H)
        logits_ref[...] = (jnp.dot(concat_out, wo_ref[...],
                                   preferred_element_type=jnp.float32)
                           + bo_ref[...])                            # (B, V)

    return kernel


# ----------------------------------------------------------------------------- wrapper

@jax.jit
def decoder_forward(params, input_ids, last_hidden, enc_bsh):
    """Mirror of Decoder.forward (single decode step), fully fused into one Pallas call.

    input_ids: (B,) int32 token ids
    last_hidden: (h0, c0), each (num_layers, B, H)
    enc_bsh: (B, S, H) encoder outputs, already transposed ONCE outside the step.
    returns (logits (B, V), (h1, c1))
    """
    h0, c0 = last_hidden
    L, B, H = h0.shape
    V = params['wo_t'].shape[1]

    ids_2d = input_ids.reshape(B, 1).astype(jnp.int32)

    args = [ids_2d, params['embedding'], h0, c0, enc_bsh]
    for l in range(L):
        args += [params['w_lstm'][l], params['b_lstm'][l]]
    args += [params['wa_t'], params['ba'],
             params['wc_t'], params['bc'],
             params['wo_t'], params['bo']]

    n_inputs = len(args)
    logits, h1, c1 = pl.pallas_call(
        make_decoder_kernel(L),
        out_shape=(jax.ShapeDtypeStruct((B, V), jnp.float32),
                   jax.ShapeDtypeStruct((L, B, H), jnp.float32),
                   jax.ShapeDtypeStruct((L, B, H), jnp.float32)),
        in_specs=[_vmem_spec()] * n_inputs,
        out_specs=(_vmem_spec(), _vmem_spec(), _vmem_spec()),
    )(*args)
    return logits, (h1, c1)


# ----------------------------------------------------------------------------- reference

def decoder_forward_ref(params, input_ids, last_hidden, enc_bsh):
    h0, c0 = last_hidden
    L, B, H = h0.shape
    x = jnp.take(params['embedding'], input_ids, axis=0)
    hs, cs = [], []
    for l in range(L):
        xh = jnp.concatenate([x, h0[l]], axis=1)
        gates = xh @ params['w_lstm'][l] + params['b_lstm'][l]
        i = jax.nn.sigmoid(gates[:, 0 * H:1 * H])
        f = jax.nn.sigmoid(gates[:, 1 * H:2 * H])
        g = jnp.tanh(gates[:, 2 * H:3 * H])
        o = jax.nn.sigmoid(gates[:, 3 * H:4 * H])
        c = f * c0[l] + i * g
        h = o * jnp.tanh(c)
        hs.append(h); cs.append(c)
        x = h
    rnn = x
    ea = jnp.einsum('bsh,hk->bsk', enc_bsh, params['wa_t']) + params['ba']
    e = jnp.einsum('bsk,bk->bs', ea, rnn)
    attn = jax.nn.softmax(e, axis=-1)
    ctx = jnp.einsum('bs,bsh->bh', attn, enc_bsh)
    concat_out = jnp.tanh(jnp.concatenate([rnn, ctx], axis=1) @ params['wc_t']
                          + params['bc'])
    logits = concat_out @ params['wo_t'] + params['bo']
    return logits, (jnp.stack(hs, 0), jnp.stack(cs, 0))


# ----------------------------------------------------------------------------- main

if __name__ == "__main__":
    # config consistent with the module: embedding_size=E, hidden_size=H,
    # num_layers=2, dropout=0.0, share_embedding=False, output_size=V
    B, S, E, H, V, num_layers = 4, 8, 32, 32, 16, 2

    key = jax.random.PRNGKey(0)
    ks = jax.random.split(key, 16)

    def glorot(k, shape):
        fan_in, fan_out = shape[0], shape[1]
        lim = (6.0 / (fan_in + fan_out)) ** 0.5
        return jax.random.uniform(k, shape, jnp.float32, -lim, lim)

    # Parameters, pre-fused / pre-transposed offline (no runtime cost):
    #   w_lstm[l] = [W_ih_l ; W_hh_l]^T  -> (In_l + H, 4H),  b_lstm[l] = b_ih + b_hh -> (1, 4H)
    #   wc_t      = concat.weight^T      -> (2H, H)
    w_lstm, b_lstm = [], []
    for l in range(num_layers):
        in_sz = E if l == 0 else H
        w_ih_t = glorot(ks[l], (in_sz, 4 * H))
        w_hh_t = glorot(ks[num_layers + l], (H, 4 * H))
        w_lstm.append(jnp.concatenate([w_ih_t, w_hh_t], axis=0))      # (In+H, 4H)
        b_lstm.append(0.01 * jnp.ones((1, 4 * H), jnp.float32))       # b_ih + b_hh folded

    params = dict(
        embedding=glorot(ks[8], (V, E)),            # xavier_uniform equivalent
        w_lstm=w_lstm, b_lstm=b_lstm,
        wa_t=glorot(ks[9], (H, H)),                 # attn_w.weight^T
        ba=0.01 * jnp.ones((1, H), jnp.float32),
        wc_t=jnp.concatenate([glorot(ks[10], (H, H)),                  # rnn half
                              glorot(ks[11], (H, H))], axis=0),        # context half
        bc=0.01 * jnp.ones((1, H), jnp.float32),
        wo_t=glorot(ks[12], (H, V)),                # output_proj.weight^T
        bo=0.01 * jnp.ones((1, V), jnp.float32),
    )

    # Inputs.
    input_ids = jax.random.randint(ks[13], (B,), 0, V, dtype=jnp.int32)
    h0 = jax.random.normal(ks[14], (num_layers, B, H), jnp.float32)
    c0 = jax.random.normal(ks[15], (num_layers, B, H), jnp.float32)
    encoder_outputs = jax.random.normal(ks[7], (S, B, H), jnp.float32)   # PyTorch (S,B,H)

    # Hoisted once per sequence (invariant across decode steps).
    enc_bsh = jnp.transpose(encoder_outputs, (1, 0, 2))                  # (B, S, H)

    logits, (h1, c1) = decoder_forward(params, input_ids, (h0, c0), enc_bsh)
    jax.block_until_ready((logits, h1, c1))

    # Sanity check vs pure-JAX reference.
    ref_logits, (ref_h1, ref_c1) = decoder_forward_ref(
        params, input_ids, (h0, c0), enc_bsh)
    assert logits.shape == (B, V) and h1.shape == (num_layers, B, H)
    assert jnp.allclose(logits, ref_logits, rtol=1e-3, atol=1e-3)
    assert jnp.allclose(h1, ref_h1, rtol=1e-3, atol=1e-3)
    assert jnp.allclose(c1, ref_c1, rtol=1e-3, atol=1e-3)

    print("KERNEL_OK")
</pallas_src>

<mosaic_0001>
module attributes {stable_mosaic.version = 11 : i64} {
  func.func @kernel(%arg0: memref<4x1xi32, #tpu.memory_space<vmem>>, %arg1: memref<16x32xf32, #tpu.memory_space<vmem>>, %arg2: memref<2x4x32xf32, #tpu.memory_space<vmem>>, %arg3: memref<2x4x32xf32, #tpu.memory_space<vmem>>, %arg4: memref<4x8x32xf32, #tpu.memory_space<vmem>>, %arg5: memref<64x128xf32, #tpu.memory_space<vmem>>, %arg6: memref<1x128xf32, #tpu.memory_space<vmem>>, %arg7: memref<64x128xf32, #tpu.memory_space<vmem>>, %arg8: memref<1x128xf32, #tpu.memory_space<vmem>>, %arg9: memref<32x32xf32, #tpu.memory_space<vmem>>, %arg10: memref<1x32xf32, #tpu.memory_space<vmem>>, %arg11: memref<64x32xf32, #tpu.memory_space<vmem>>, %arg12: memref<1x32xf32, #tpu.memory_space<vmem>>, %arg13: memref<32x16xf32, #tpu.memory_space<vmem>>, %arg14: memref<1x16xf32, #tpu.memory_space<vmem>>, %arg15: memref<4x16xf32, #tpu.memory_space<vmem>>, %arg16: memref<2x4x32xf32, #tpu.memory_space<vmem>>, %arg17: memref<2x4x32xf32, #tpu.memory_space<vmem>>) attributes {dimension_semantics = [], scalar_prefetch = 0 : i64, scratch_operands = 0 : i64, tpu.core_type = #tpu.core_type<tc>} {
    %c0 = arith.constant 0 : index
    %c0_0 = arith.constant 0 : index
    %0 = vector.load %arg0[%c0, %c0_0] : memref<4x1xi32, #tpu.memory_space<vmem>>, vector<4x1xi32>
    %1 = tpu.iota {dimensions = array<i32: 1>} : vector<4x16xi32>
    %2 = vector.broadcast %0 : vector<4x1xi32> to vector<4x16xi32>
    %3 = arith.cmpi eq, %2, %1 : vector<4x16xi32>
    %4 = arith.extui %3 : vector<4x16xi1> to vector<4x16xi32>
    %5 = arith.sitofp %4 : vector<4x16xi32> to vector<4x16xf32>
    %c0_1 = arith.constant 0 : index
    %c0_2 = arith.constant 0 : index
    %6 = vector.load %arg1[%c0_1, %c0_2] : memref<16x32xf32, #tpu.memory_space<vmem>>, vector<16x32xf32>
    %cst = arith.constant dense<0.000000e+00> : vector<4x32xf32>
    %7 = tpu.matmul %5, %6, %cst {dimension_numbers = #tpu.dot_dimension_numbers<[1], [0], [0], [1], [0, 0, 1, 1], [], []>} : vector<4x16xf32>, vector<16x32xf32>, vector<4x32xf32> -> vector<4x32xf32>
    %c0_3 = arith.constant 0 : index
    %c0_4 = arith.constant 0 : index
    %c0_5 = arith.constant 0 : index
    %8 = vector.load %arg2[%c0_3, %c0_4, %c0_5] : memref<2x4x32xf32, #tpu.memory_space<vmem>>, vector<1x4x32xf32>
    %9 = vector.shape_cast %8 : vector<1x4x32xf32> to vector<4x32xf32>
    %c0_6 = arith.constant 0 : index
    %c0_7 = arith.constant 0 : index
    %c0_8 = arith.constant 0 : index
    %10 = vector.load %arg3[%c0_6, %c0_7, %c0_8] : memref<2x4x32xf32, #tpu.memory_space<vmem>>, vector<1x4x32xf32>
    %11 = vector.shape_cast %10 : vector<1x4x32xf32> to vector<4x32xf32>
    %12 = tpu.concatenate %7, %9 in 1 : vector<4x32xf32>, vector<4x32xf32> -> vector<4x64xf32>
    %c0_9 = arith.constant 0 : index
    %c0_10 = arith.constant 0 : index
    %13 = vector.load %arg5[%c0_9, %c0_10] : memref<64x128xf32, #tpu.memory_space<vmem>>, vector<64x128xf32>
    %cst_11 = arith.constant dense<0.000000e+00> : vector<4x128xf32>
    %14 = tpu.matmul %12, %13, %cst_11 {dimension_numbers = #tpu.dot_dimension_numbers<[1], [0], [0], [1], [0, 0, 1, 1], [], []>} : vector<4x64xf32>, vector<64x128xf32>, vector<4x128xf32> -> vector<4x128xf32>
    %c0_12 = arith.constant 0 : index
    %c0_13 = arith.constant 0 : index
    %15 = vector.load %arg6[%c0_12, %c0_13] : memref<1x128xf32, #tpu.memory_space<vmem>>, vector<1x128xf32>
    %16 = vector.broadcast %15 : vector<1x128xf32> to vector<4x128xf32>
    %17 = arith.addf %14, %16 : vector<4x128xf32>
    %18 = vector.extract_strided_slice %17 {offsets = [0, 0], sizes = [4, 32], strides = [1, 1]} : vector<4x128xf32> to vector<4x32xf32>
    %19 = arith.negf %18 : vector<4x32xf32>
    %20 = math.exp %19 : vector<4x32xf32>
    %cst_14 = arith.constant 1.000000e+00 : f32
    %21 = vector.broadcast %cst_14 : f32 to vector<4x32xf32>
    %22 = arith.addf %21, %20 : vector<4x32xf32>
    %23 = arith.divf %21, %22 : vector<4x32xf32>
    %24 = vector.extract_strided_slice %17 {offsets = [0, 32], sizes = [4, 32], strides = [1, 1]} : vector<4x128xf32> to vector<4x32xf32>
    %25 = arith.negf %24 : vector<4x32xf32>
    %26 = math.exp %25 : vector<4x32xf32>
    %cst_15 = arith.constant 1.000000e+00 : f32
    %27 = vector.broadcast %cst_15 : f32 to vector<4x32xf32>
    %28 = arith.addf %27, %26 : vector<4x32xf32>
    %29 = arith.divf %27, %28 : vector<4x32xf32>
    %30 = vector.extract_strided_slice %17 {offsets = [0, 64], sizes = [4, 32], strides = [1, 1]} : vector<4x128xf32> to vector<4x32xf32>
    %31 = math.tanh %30 : vector<4x32xf32>
    %32 = vector.extract_strided_slice %17 {offsets = [0, 96], sizes = [4, 32], strides = [1, 1]} : vector<4x128xf32> to vector<4x32xf32>
    %33 = arith.negf %32 : vector<4x32xf32>
    %34 = math.exp %33 : vector<4x32xf32>
    %cst_16 = arith.constant 1.000000e+00 : f32
    %35 = vector.broadcast %cst_16 : f32 to vector<4x32xf32>
    %36 = arith.addf %35, %34 : vector<4x32xf32>
    %37 = arith.divf %35, %36 : vector<4x32xf32>
    %38 = arith.mulf %29, %11 : vector<4x32xf32>
    %39 = arith.mulf %23, %31 : vector<4x32xf32>
    %40 = arith.addf %38, %39 : vector<4x32xf32>
    %41 = math.tanh %40 : vector<4x32xf32>
    %42 = arith.mulf %37, %41 : vector<4x32xf32>
    %c0_17 = arith.constant 0 : index
    %c0_18 = arith.constant 0 : index
    %c0_19 = arith.constant 0 : index
    %43 = vector.load %arg16[%c0_17, %c0_18, %c0_19] : memref<2x4x32xf32, #tpu.memory_space<vmem>>, vector<1x4x32xf32>
    %44 = vector.shape_cast %43 : vector<1x4x32xf32> to vector<4x32xf32>
    %45 = vector.shape_cast %42 : vector<4x32xf32> to vector<1x4x32xf32>
    tpu.vector_store %arg16[%c0_17, %c0_18, %c0_19], %45 {strides = array<i32>} : memref<2x4x32xf32, #tpu.memory_space<vmem>>, vector<1x4x32xf32>,
    %c0_20 = arith.constant 0 : index
    %c0_21 = arith.constant 0 : index
    %c0_22 = arith.constant 0 : index
    %46 = vector.load %arg17[%c0_20, %c0_21, %c0_22] : memref<2x4x32xf32, #tpu.memory_space<vmem>>, vector<1x4x32xf32>
    %47 = vector.shape_cast %46 : vector<1x4x32xf32> to vector<4x32xf32>
    %48 = vector.shape_cast %40 : vector<4x32xf32> to vector<1x4x32xf32>
    tpu.vector_store %arg17[%c0_20, %c0_21, %c0_22], %48 {strides = array<i32>} : memref<2x4x32xf32, #tpu.memory_space<vmem>>, vector<1x4x32xf32>,
    %c1 = arith.constant 1 : index
    %c0_23 = arith.constant 0 : index
    %c0_24 = arith.constant 0 : index
    %49 = vector.load %arg2[%c1, %c0_23, %c0_24] : memref<2x4x32xf32, #tpu.memory_space<vmem>>, vector<1x4x32xf32>
    %50 = vector.shape_cast %49 : vector<1x4x32xf32> to vector<4x32xf32>
    %c1_25 = arith.constant 1 : index
    %c0_26 = arith.constant 0 : index
    %c0_27 = arith.constant 0 : index
    %51 = vector.load %arg3[%c1_25, %c0_26, %c0_27] : memref<2x4x32xf32, #tpu.memory_space<vmem>>, vector<1x4x32xf32>
    %52 = vector.shape_cast %51 : vector<1x4x32xf32> to vector<4x32xf32>
    %53 = tpu.concatenate %42, %50 in 1 : vector<4x32xf32>, vector<4x32xf32> -> vector<4x64xf32>
    %c0_28 = arith.constant 0 : index
    %c0_29 = arith.constant 0 : index
    %54 = vector.load %arg7[%c0_28, %c0_29] : memref<64x128xf32, #tpu.memory_space<vmem>>, vector<64x128xf32>
    %cst_30 = arith.constant dense<0.000000e+00> : vector<4x128xf32>
    %55 = tpu.matmul %53, %54, %cst_30 {dimension_numbers = #tpu.dot_dimension_numbers<[1], [0], [0], [1], [0, 0, 1, 1], [], []>} : vector<4x64xf32>, vector<64x128xf32>, vector<4x128xf32> -> vector<4x128xf32>
    %c0_31 = arith.constant 0 : index
    %c0_32 = arith.constant 0 : index
    %56 = vector.load %arg8[%c0_31, %c0_32] : memref<1x128xf32, #tpu.memory_space<vmem>>, vector<1x128xf32>
    %57 = vector.broadcast %56 : vector<1x128xf32> to vector<4x128xf32>
    %58 = arith.addf %55, %57 : vector<4x128xf32>
    %59 = vector.extract_strided_slice %58 {offsets = [0, 0], sizes = [4, 32], strides = [1, 1]} : vector<4x128xf32> to vector<4x32xf32>
    %60 = arith.negf %59 : vector<4x32xf32>
    %61 = math.exp %60 : vector<4x32xf32>
    %cst_33 = arith.constant 1.000000e+00 : f32
    %62 = vector.broadcast %cst_33 : f32 to vector<4x32xf32>
    %63 = arith.addf %62, %61 : vector<4x32xf32>
    %64 = arith.divf %62, %63 : vector<4x32xf32>
    %65 = vector.extract_strided_slice %58 {offsets = [0, 32], sizes = [4, 32], strides = [1, 1]} : vector<4x128xf32> to vector<4x32xf32>
    %66 = arith.negf %65 : vector<4x32xf32>
    %67 = math.exp %66 : vector<4x32xf32>
    %cst_34 = arith.constant 1.000000e+00 : f32
    %68 = vector.broadcast %cst_34 : f32 to vector<4x32xf32>
    %69 = arith.addf %68, %67 : vector<4x32xf32>
    %70 = arith.divf %68, %69 : vector<4x32xf32>
    %71 = vector.extract_strided_slice %58 {offsets = [0, 64], sizes = [4, 32], strides = [1, 1]} : vector<4x128xf32> to vector<4x32xf32>
    %72 = math.tanh %71 : vector<4x32xf32>
    %73 = vector.extract_strided_slice %58 {offsets = [0, 96], sizes = [4, 32], strides = [1, 1]} : vector<4x128xf32> to vector<4x32xf32>
    %74 = arith.negf %73 : vector<4x32xf32>
    %75 = math.exp %74 : vector<4x32xf32>
    %cst_35 = arith.constant 1.000000e+00 : f32
    %76 = vector.broadcast %cst_35 : f32 to vector<4x32xf32>
    %77 = arith.addf %76, %75 : vector<4x32xf32>
    %78 = arith.divf %76, %77 : vector<4x32xf32>
    %79 = arith.mulf %70, %52 : vector<4x32xf32>
    %80 = arith.mulf %64, %72 : vector<4x32xf32>
    %81 = arith.addf %79, %80 : vector<4x32xf32>
    %82 = math.tanh %81 : vector<4x32xf32>
    %83 = arith.mulf %78, %82 : vector<4x32xf32>
    %c1_36 = arith.constant 1 : index
    %c0_37 = arith.constant 0 : index
    %c0_38 = arith.constant 0 : index
    %84 = vector.load %arg16[%c1_36, %c0_37, %c0_38] : memref<2x4x32xf32, #tpu.memory_space<vmem>>, vector<1x4x32xf32>
    %85 = vector.shape_cast %84 : vector<1x4x32xf32> to vector<4x32xf32>
    %86 = vector.shape_cast %83 : vector<4x32xf32> to vector<1x4x32xf32>
    tpu.vector_store %arg16[%c1_36, %c0_37, %c0_38], %86 {strides = array<i32>} : memref<2x4x32xf32, #tpu.memory_space<vmem>>, vector<1x4x32xf32>,
    %c1_39 = arith.constant 1 : index
    %c0_40 = arith.constant 0 : index
    %c0_41 = arith.constant 0 : index
    %87 = vector.load %arg17[%c1_39, %c0_40, %c0_41] : memref<2x4x32xf32, #tpu.memory_space<vmem>>, vector<1x4x32xf32>
    %88 = vector.shape_cast %87 : vector<1x4x32xf32> to vector<4x32xf32>
    %89 = vector.shape_cast %81 : vector<4x32xf32> to vector<1x4x32xf32>
    tpu.vector_store %arg17[%c1_39, %c0_40, %c0_41], %89 {strides = array<i32>} : memref<2x4x32xf32, #tpu.memory_space<vmem>>, vector<1x4x32xf32>,
    %c0_42 = arith.constant 0 : index
    %c0_43 = arith.constant 0 : index
    %c0_44 = arith.constant 0 : index
    %90 = vector.load %arg4[%c0_42, %c0_43, %c0_44] : memref<4x8x32xf32, #tpu.memory_space<vmem>>, vector<4x8x32xf32>
    %91 = vector.shape_cast %90 : vector<4x8x32xf32> to vector<32x32xf32>
    %c0_45 = arith.constant 0 : index
    %c0_46 = arith.constant 0 : index
    %92 = vector.load %arg9[%c0_45, %c0_46] : memref<32x32xf32, #tpu.memory_space<vmem>>, vector<32x32xf32>
    %cst_47 = arith.constant dense<0.000000e+00> : vector<32x32xf32>
    %93 = tpu.matmul %91, %92, %cst_47 {dimension_numbers = #tpu.dot_dimension_numbers<[1], [0], [0], [1], [0, 0, 1, 1], [], []>} : vector<32x32xf32>, vector<32x32xf32>, vector<32x32xf32> -> vector<32x32xf32>
    %c0_48 = arith.constant 0 : index
    %c0_49 = arith.constant 0 : index
    %94 = vector.load %arg10[%c0_48, %c0_49] : memref<1x32xf32, #tpu.memory_space<vmem>>, vector<1x32xf32>
    %95 = vector.broadcast %94 : vector<1x32xf32> to vector<32x32xf32>
    %96 = arith.addf %93, %95 : vector<32x32xf32>
    %97 = vector.shape_cast %96 : vector<32x32xf32> to vector<4x8x32xf32>
    %98 = vector.shape_cast %83 : vector<4x32xf32> to vector<4x1x32xf32>
    %99 = vector.broadcast %98 : vector<4x1x32xf32> to vector<4x8x32xf32>
    %100 = arith.mulf %97, %99 : vector<4x8x32xf32>
    %cst_50 = arith.constant dense<0.000000e+00> : vector<4x8xf32>
    %101 = vector.multi_reduction <add>, %100, %cst_50 [2] : vector<4x8x32xf32> to vector<4x8xf32>
    %cst_51 = arith.constant dense<0xFF800000> : vector<4xf32>
    %102 = vector.multi_reduction <maximumf>, %101, %cst_51 [1] : vector<4x8xf32> to vector<4xf32>
    %cst_52 = arith.constant 0xFF800000 : f32
    %103 = vector.broadcast %cst_52 : f32 to vector<4xf32>
    %104 = arith.maximumf %103, %102 : vector<4xf32>
    %105 = vector.shape_cast %104 : vector<4xf32> to vector<4x1xf32>
    %106 = vector.broadcast %105 : vector<4x1xf32> to vector<4x8xf32>
    %107 = arith.subf %101, %106 : vector<4x8xf32>
    %108 = math.exp %107 : vector<4x8xf32>
    %cst_53 = arith.constant dense<0.000000e+00> : vector<4xf32>
    %109 = vector.multi_reduction <add>, %108, %cst_53 [1] : vector<4x8xf32> to vector<4xf32>
    %110 = vector.shape_cast %109 : vector<4xf32> to vector<4x1xf32>
    %111 = vector.broadcast %110 : vector<4x1xf32> to vector<4x8xf32>
    %112 = arith.divf %108, %111 : vector<4x8xf32>
    %113 = vector.shape_cast %112 : vector<4x8xf32> to vector<4x8x1xf32>
    %114 = vector.broadcast %113 : vector<4x8x1xf32> to vector<4x8x32xf32>
    %115 = arith.mulf %114, %90 : vector<4x8x32xf32>
    %cst_54 = arith.constant dense<0.000000e+00> : vector<4x32xf32>
    %116 = vector.multi_reduction <add>, %115, %cst_54 [1] : vector<4x8x32xf32> to vector<4x32xf32>
    %117 = tpu.concatenate %83, %116 in 1 : vector<4x32xf32>, vector<4x32xf32> -> vector<4x64xf32>
    %c0_55 = arith.constant 0 : index
    %c0_56 = arith.constant 0 : index
    %118 = vector.load %arg11[%c0_55, %c0_56] : memref<64x32xf32, #tpu.memory_space<vmem>>, vector<64x32xf32>
    %cst_57 = arith.constant dense<0.000000e+00> : vector<4x32xf32>
    %119 = tpu.matmul %117, %118, %cst_57 {dimension_numbers = #tpu.dot_dimension_numbers<[1], [0], [0], [1], [0, 0, 1, 1], [], []>} : vector<4x64xf32>, vector<64x32xf32>, vector<4x32xf32> -> vector<4x32xf32>
    %c0_58 = arith.constant 0 : index
    %c0_59 = arith.constant 0 : index
    %120 = vector.load %arg12[%c0_58, %c0_59] : memref<1x32xf32, #tpu.memory_space<vmem>>, vector<1x32xf32>
    %121 = vector.broadcast %120 : vector<1x32xf32> to vector<4x32xf32>
    %122 = arith.addf %119, %121 : vector<4x32xf32>
    %123 = math.tanh %122 : vector<4x32xf32>
    %c0_60 = arith.constant 0 : index
    %c0_61 = arith.constant 0 : index
    %124 = vector.load %arg13[%c0_60, %c0_61] : memref<32x16xf32, #tpu.memory_space<vmem>>, vector<32x16xf32>
    %cst_62 = arith.constant dense<0.000000e+00> : vector<4x16xf32>
    %125 = tpu.matmul %123, %124, %cst_62 {dimension_numbers = #tpu.dot_dimension_numbers<[1], [0], [0], [1], [0, 0, 1, 1], [], []>} : vector<4x32xf32>, vector<32x16xf32>, vector<4x16xf32> -> vector<4x16xf32>
    %c0_63 = arith.constant 0 : index
    %c0_64 = arith.constant 0 : index
    %126 = vector.load %arg14[%c0_63, %c0_64] : memref<1x16xf32, #tpu.memory_space<vmem>>, vector<1x16xf32>
    %127 = vector.broadcast %126 : vector<1x16xf32> to vector<4x16xf32>
    %128 = arith.addf %125, %127 : vector<4x16xf32>
    %c0_65 = arith.constant 0 : index
    %c0_66 = arith.constant 0 : index
    %129 = vector.load %arg15[%c0_65, %c0_66] : memref<4x16xf32, #tpu.memory_space<vmem>>, vector<4x16xf32>
    tpu.vector_store %arg15[%c0_65, %c0_66], %128 {strides = array<i32>} : memref<4x16xf32, #tpu.memory_space<vmem>>, vector<4x16xf32>,
    return
  }
}

</mosaic_0001>

<llo_original>
// kernel: decoder_forward.1
$region0: #{decoder_forward.1}
  #allocation0 [shape = 'u32[]', space=smem, size = 0x4, offset = 0x4, fixed_abs, tag = 'smem constant byte address 0x4 - core index']
  #allocation1 [shape = 'u32[144,128]{1,0:T(1,128)}', space=vmem, size = 0x12000, scoped, tag = 'internal scratch']
  %s0 = inlined_call_operand.vmem [shape: s32[4,1], index: 0, kind: input, shape index: {}]
  %s1 = inlined_call_operand.hbm [shape: f32[16,32], index: 1, kind: input, shape index: {}]
  %s2 = inlined_call_operand.hbm [shape: f32[2,4,32], index: 2, kind: input, shape index: {}]
  %s3 = inlined_call_operand.vmem [shape: f32[2,4,32], index: 3, kind: input, shape index: {}]
  %s4 = inlined_call_operand.vmem [shape: f32[4,8,32], index: 4, kind: input, shape index: {}]
  %s5 = inlined_call_operand.vmem [shape: f32[64,128], index: 5, kind: input, shape index: {}]
  %s6 = inlined_call_operand.hbm [shape: f32[1,128], index: 6, kind: input, shape index: {}]
  %s7 = inlined_call_operand.vmem [shape: f32[64,128], index: 7, kind: input, shape index: {}]
  %s8 = inlined_call_operand.hbm [shape: f32[1,128], index: 8, kind: input, shape index: {}]
  %s9 = inlined_call_operand.hbm [shape: f32[32,32], index: 9, kind: input, shape index: {}]
  %s10 = inlined_call_operand.hbm [shape: f32[1,32], index: 10, kind: input, shape index: {}]
  %s11 = inlined_call_operand.vmem [shape: f32[64,32], index: 11, kind: input, shape index: {}]
  %s12 = inlined_call_operand.vmem [shape: f32[1,32], index: 12, kind: input, shape index: {}]
  %s13 = inlined_call_operand.vmem [shape: f32[32,16], index: 13, kind: input, shape index: {}]
  %s14 = inlined_call_operand.hbm [shape: f32[1,16], index: 14, kind: input, shape index: {}]
  %s15 = inlined_call_operand.hbm [shape: f32[4,16], index: 15, kind: output, shape index: {0}]
  %s16 = inlined_call_operand.hbm [shape: f32[2,4,32], index: 16, kind: output, shape index: {1}]
  %s17 = inlined_call_operand.hbm [shape: f32[2,4,32], index: 17, kind: output, shape index: {2}]
  %18 = xla_tuple %s15, %s16, %s17
  %s19 = sld [smem:[#allocation0]]
  $region114: #{decoder_forward.1} parent=0
    _
  %s21 = ssub.s32 1, %s19
  %s22 = scalar_select 0, %s21, %s19
  $region1: #{decoder_forward.1} parent=0
    #allocation2 [shape = 'u8[8192]{0}', space=vmem, size = 0x2000, scoped, tag = 'input window, operand 1, single buffered']
    #allocation3 [shape = 's32[1]{0}', space=sflag, size = 0x4, scoped, tag = 'scoped memory for decoder_forward.1']
    #allocation4 [shape = 's32[1]{0}', space=sflag, size = 0x4, scoped, tag = 'scoped memory for decoder_forward.1']
    #allocation5 [shape = 'u8[4096]{0}', space=vmem, size = 0x1000, scoped, tag = 'input window, operand 2, single buffered']
    #allocation6 [shape = 's32[1]{0}', space=sflag, size = 0x4, scoped, tag = 'scoped memory for decoder_forward.1']
    #allocation7 [shape = 'u8[512]{0}', space=vmem, size = 0x400, scoped, tag = 'input window, operand 6, single buffered']
    #allocation8 [shape = 'u8[512]{0}', space=vmem, size = 0x400, scoped, tag = 'input window, operand 8, single buffered']
    #allocation9 [shape = 's32[1]{0}', space=sflag, size = 0x4, scoped, tag = 'scoped memory for decoder_forward.1']
    #allocation10 [shape = 'u8[16384]{0}', space=vmem, size = 0x4000, scoped, tag = 'input window, operand 9, single buffered']
    #allocation11 [shape = 'u8[512]{0}', space=vmem, size = 0x400, scoped, tag = 'input window, operand 10, single buffered']
    #allocation12 [shape = 's32[1]{0}', space=sflag, size = 0x4, scoped, tag = 'scoped memory for decoder_forward.1']
    #allocation13 [shape = 'u8[512]{0}', space=vmem, size = 0x400, scoped, tag = 'input window, operand 14, single buffered']
    #allocation14 [shape = 'u8[2048]{0}', space=vmem, size = 0x800, scoped, tag = 'output window, operand 0, single buffered']
    #allocation15 [shape = 'u8[4096]{0}', space=vmem, size = 0x1000, scoped, tag = 'output window, operand 1, single buffered']
    #allocation16 [shape = 's32[1]{0}', space=sflag, size = 0x4, scoped, tag = 'scoped memory for decoder_forward.1']
    #allocation17 [shape = 'u8[4096]{0}', space=vmem, size = 0x1000, scoped, tag = 'output window, operand 2, single buffered']
    %23 = vsyncpa [#allocation3], 0
    %24 = vsyncpa [#allocation6], 0
    %25 = vsyncpa [#allocation9], 0
    %26 = vsyncpa [#allocation12], 0
    %27 = vsyncpa [#allocation4], 0
    %28 = vsyncpa [#allocation16], 0
    // Predicated region
    $region2: #{decoder_forward.1} parent=1 // pred_check
      _
    $region3: #{decoder_forward.1} parent=1 // pred_check_branch
      %30 = sbr.rel (0) target = $region5
    $region4: #{decoder_forward.1} parent=1 // pred_region
      _
    $region5: #{decoder_forward.1} parent=1 // pred_fallthru
      _
    // Predicated region
    $region6: #{decoder_forward.1} parent=1 // pred_check
      _
    $region7: #{decoder_forward.1} parent=1 // pred_check_branch
      %32 = sbr.rel (0) target = $region9
    $region8: #{decoder_forward.1} parent=1 // pred_region
      %s34 = ssub.s32 256, 256
      %35 = vsyncadd [#allocation3], %s34
      %s36 = sshll.u32 [#allocation2], 4
      %s37 = int_to_ptr.vmem [resolvable:$true] %s36
      %42 = dma.hbm_to_vmem [thread:$0]  %s1, 256, %s37, [#allocation3], 128, 128, 8
    $region9: #{decoder_forward.1} parent=1 // pred_fallthru
      _
    // Predicated region
    $region10: #{decoder_forward.1} parent=1 // pred_check
      _
    $region11: #{decoder_forward.1} parent=1 // pred_check_branch
      %44 = sbr.rel (0) target = $region13
    $region12: #{decoder_forward.1} parent=1 // pred_region
      %s46 = ssub.s32 128, 128
      %47 = vsyncadd [#allocation6], %s46
      %s48 = sshll.u32 [#allocation5], 4
      %s49 = int_to_ptr.vmem [resolvable:$true] %s48
      %54 = dma.hbm_to_vmem [thread:$0]  %s2, 128, %s49, [#allocation6], 64, 64, 4
    $region13: #{decoder_forward.1} parent=1 // pred_fallthru
      _
    // Predicated region
    $region14: #{decoder_forward.1} parent=1 // pred_check
      _
    $region15: #{decoder_forward.1} parent=1 // pred_check_branch
      %56 = sbr.rel (0) target = $region17
    $region16: #{decoder_forward.1} parent=1 // pred_region
      _
    $region17: #{decoder_forward.1} parent=1 // pred_fallthru
      _
    // Predicated region
    $region18: #{decoder_forward.1} parent=1 // pred_check
      _
    $region19: #{decoder_forward.1} parent=1 // pred_check_branch
      %58 = sbr.rel (0) target = $region21
    $region20: #{decoder_forward.1} parent=1 // pred_region
      _
    $region21: #{decoder_forward.1} parent=1 // pred_fallthru
      _
    // Predicated region
    $region22: #{decoder_forward.1} parent=1 // pred_check
      _
    $region23: #{decoder_forward.1} parent=1 // pred_check_branch
      %60 = sbr.rel (0) target = $region25
    $region24: #{decoder_forward.1} parent=1 // pred_region
      _
    $region25: #{decoder_forward.1} parent=1 // pred_fallthru
      _
    // Predicated region
    $region26: #{decoder_forward.1} parent=1 // pred_check
      _
    $region27: #{decoder_forward.1} parent=1 // pred_check_branch
      %62 = sbr.rel (0) target = $region29
    $region28: #{decoder_forward.1} parent=1 // pred_region
      %s64 = ssub.s32 16, 16
      %65 = vsyncadd [#allocation6], %s64
      %s67 = sshll.u32 [#allocation7], 4
      %s68 = int_to_ptr.vmem [resolvable:$true] %s67
      %70 = dma.hbm_to_vmem [thread:$0]  %s6, 16, %s68, [#allocation6]
    $region29: #{decoder_forward.1} parent=1 // pred_fallthru
      _
    // Predicated region
    $region30: #{decoder_forward.1} parent=1 // pred_check
      _
    $region31: #{decoder_forward.1} parent=1 // pred_check_branch
      %72 = sbr.rel (0) target = $region33
    $region32: #{decoder_forward.1} parent=1 // pred_region
      _
    $region33: #{decoder_forward.1} parent=1 // pred_fallthru
      _
    // Predicated region
    $region34: #{decoder_forward.1} parent=1 // pred_check
      _
    $region35: #{decoder_forward.1} parent=1 // pred_check_branch
      %74 = sbr.rel (0) target = $region37
    $region36: #{decoder_forward.1} parent=1 // pred_region
      %s76 = ssub.s32 16, 16
      %77 = vsyncadd [#allocation9], %s76
      %s79 = sshll.u32 [#allocation8], 4
      %s80 = int_to_ptr.vmem [resolvable:$true] %s79
      %82 = dma.hbm_to_vmem [thread:$0]  %s8, 16, %s80, [#allocation9]
    $region37: #{decoder_forward.1} parent=1 // pred_fallthru
      _
    // Predicated region
    $region38: #{decoder_forward.1} parent=1 // pred_check
      _
    $region39: #{decoder_forward.1} parent=1 // pred_check_branch
      %84 = sbr.rel (0) target = $region41
    $region40: #{decoder_forward.1} parent=1 // pred_region
      %s86 = ssub.s32 512, 512
      %87 = vsyncadd [#allocation9], %s86
      %s88 = sshll.u32 [#allocation10], 4
      %s89 = int_to_ptr.vmem [resolvable:$true] %s88
      %94 = dma.hbm_to_vmem [thread:$0]  %s9, 512, %s89, [#allocation9], 128, 128, 8
    $region41: #{decoder_forward.1} parent=1 // pred_fallthru
      _
    // Predicated region
    $region42: #{decoder_forward.1} parent=1 // pred_check
      _
    $region43: #{decoder_forward.1} parent=1 // pred_check_branch
      %96 = sbr.rel (0) target = $region45
    $region44: #{decoder_forward.1} parent=1 // pred_region
      %s98 = ssub.s32 16, 16
      %99 = vsyncadd [#allocation12], %s98
      %s101 = sshll.u32 [#allocation11], 4
      %s102 = int_to_ptr.vmem [resolvable:$true] %s101
      %104 = dma.hbm_to_vmem [thread:$0]  %s10, 16, %s102, [#allocation12]
    $region45: #{decoder_forward.1} parent=1 // pred_fallthru
      _
    // Predicated region
    $region46: #{decoder_forward.1} parent=1 // pred_check
      _
    $region47: #{decoder_forward.1} parent=1 // pred_check_branch
      %106 = sbr.rel (0) target = $region49
    $region48: #{decoder_forward.1} parent=1 // pred_region
      _
    $region49: #{decoder_forward.1} parent=1 // pred_fallthru
      _
    // Predicated region
    $region50: #{decoder_forward.1} parent=1 // pred_check
      _
    $region51: #{decoder_forward.1} parent=1 // pred_check_branch
      %108 = sbr.rel (0) target = $region53
    $region52: #{decoder_forward.1} parent=1 // pred_region
      _
    $region53: #{decoder_forward.1} parent=1 // pred_fallthru
      _
    // Predicated region
    $region54: #{decoder_forward.1} parent=1 // pred_check
      _
    $region55: #{decoder_forward.1} parent=1 // pred_check_branch
      %110 = sbr.rel (0) target = $region57
    $region56: #{decoder_forward.1} parent=1 // pred_region
      _
    $region57: #{decoder_forward.1} parent=1 // pred_fallthru
      _
    // Predicated region
    $region58: #{decoder_forward.1} parent=1 // pred_check
      _
    $region59: #{decoder_forward.1} parent=1 // pred_check_branch
      %112 = sbr.rel (0) target = $region61
    $region60: #{decoder_forward.1} parent=1 // pred_region
      %s114 = ssub.s32 16, 16
      %115 = vsyncadd [#allocation12], %s114
      %s117 = sshll.u32 [#allocation13], 4
      %s118 = int_to_ptr.vmem [resolvable:$true] %s117
      %120 = dma.hbm_to_vmem [thread:$0]  %s14, 16, %s118, [#allocation12]
    $region61: #{decoder_forward.1} parent=1 // pred_fallthru
      _
    // Predicated region
    $region62: #{decoder_forward.1} parent=1 // pred_check
      _
    $region63: #{decoder_forward.1} parent=1 // pred_check_branch
      %122 = sbr.rel (0) target = $region65
    $region64: #{decoder_forward.1} parent=1 // pred_region
      %123 = dma.done [#allocation3], 256
    $region65: #{decoder_forward.1} parent=1 // pred_fallthru
      _
    // Predicated region
    $region66: #{decoder_forward.1} parent=1 // pred_check
      _
    $region67: #{decoder_forward.1} parent=1 // pred_check_branch
      %125 = sbr.rel (0) target = $region69
    $region68: #{decoder_forward.1} parent=1 // pred_region
      %126 = dma.done [#allocation6], 128
    $region69: #{decoder_forward.1} parent=1 // pred_fallthru
      _
    // Predicated region
    $region70: #{decoder_forward.1} parent=1 // pred_check
      _
    $region71: #{decoder_forward.1} parent=1 // pred_check_branch
      %128 = sbr.rel (0) target = $region73
    $region72: #{decoder_forward.1} parent=1 // pred_region
      %129 = dma.done [#allocation6], 16
    $region73: #{decoder_forward.1} parent=1 // pred_fallthru
      _
    // Predicated region
    $region74: #{decoder_forward.1} parent=1 // pred_check
      _
    $region75: #{decoder_forward.1} parent=1 // pred_check_branch
      %131 = sbr.rel (0) target = $region77
    $region76: #{decoder_forward.1} parent=1 // pred_region
      %132 = dma.done [#allocation9], 16
    $region77: #{decoder_forward.1} parent=1 // pred_fallthru
      _
    // Predicated region
    $region78: #{decoder_forward.1} parent=1 // pred_check
      _
    $region79: #{decoder_forward.1} parent=1 // pred_check_branch
      %134 = sbr.rel (0) target = $region81
    $region80: #{decoder_forward.1} parent=1 // pred_region
      %135 = dma.done [#allocation9], 512
    $region81: #{decoder_forward.1} parent=1 // pred_fallthru
      _
    // Predicated region
    $region82: #{decoder_forward.1} parent=1 // pred_check
      _
    $region83: #{decoder_forward.1} parent=1 // pred_check_branch
      %137 = sbr.rel (0) target = $region85
    $region84: #{decoder_forward.1} parent=1 // pred_region
      %138 = dma.done [#allocation12], 16
    $region85: #{decoder_forward.1} parent=1 // pred_fallthru
      _
    // Predicated region
    $region86: #{decoder_forward.1} parent=1 // pred_check
      _
    $region87: #{decoder_forward.1} parent=1 // pred_check_branch
      %140 = sbr.rel (0) target = $region89
    $region88: #{decoder_forward.1} parent=1 // pred_region
      %141 = dma.done [#allocation12], 16
    $region89: #{decoder_forward.1} parent=1 // pred_fallthru
      _
    %v142 = vld [vmem:[%s0] sm:$0xf]
    %v143 = vlaneseq
    %v144 = vand.u32 %v143, 127
    %145 = vset.pattern.permute.xlu0 0
    %146 = vperm.xlu0 %145, %v142
    %v147 = vpop.permute.xlu0 %146
    %vm148 = vcmp.eq.s32.totalorder %v147, %v144
    %v149 = vsel %vm148, 1, 0
    %v150 = vcvt.s32.f32 %v149
    %v151 = vld [vmem:[#allocation2] sm:$0xff]
    %v152 = vld [vmem:[#allocation2 + $0x8] sm:$0xff]
    %vm153 = vcmask 130048
    %v155 = vsel %vm153, %v150, 0
    %157 = vmatprep.subr.mxu0 0.0
    %158 = vmatpush1.msra.mxu0 %v151
    %159 = vmatprep.subr.mxu0 0.0
    %160 = vmatpush1.msra.mxu0 %v152
    %161 = vmatprep.subr.mxu0 0.0
    %162 = vmatpush1.msra.mxu0 0.0
    %163 = vmatprep.subr.mxu0 0.0
    %164 = vmatpush1.msra.mxu0 0.0
    %165 = vmatprep.subr.mxu0 0.0
    %166 = vmatpush1.msra.mxu0 0.0
    %167 = vmatprep.subr.mxu0 0.0
    %168 = vmatpush1.msra.mxu0 0.0
    %169 = vmatprep.subr.mxu0 0.0
    %170 = vmatpush1.msra.mxu0 0.0
    %171 = vmatprep.subr.mxu0 0.0
    %172 = vmatpush1.msra.mxu0 0.0
    %173 = vmatprep.subr.mxu0 0.0
    %174 = vmatpush1.msra.mxu0 0.0
    %175 = vmatprep.subr.mxu0 0.0
    %176 = vmatpush1.msra.mxu0 0.0
    %177 = vmatprep.subr.mxu0 0.0
    %178 = vmatpush1.msra.mxu0 0.0
    %179 = vmatprep.subr.mxu0 0.0
    %180 = vmatpush1.msra.mxu0 0.0
    %181 = vmatprep.subr.mxu0 0.0
    %182 = vmatpush1.msra.mxu0 0.0
    %183 = vmatprep.subr.mxu0 0.0
    %184 = vmatpush1.msra.mxu0 0.0
    %185 = vmatprep.subr.mxu0 0.0
    %186 = vmatpush1.msra.mxu0 0.0
    %187 = vmatprep.subr.mxu0 0.0
    %188 = vmatpush1.msra.mxu0 0.0
    %189 = vmatprep.subr.mxu0 0.0
    %190 = vmatpush1.msra.mxu0 0.0
    %191 = vmatprep.subr.mxu0 0.0
    %192 = vmatpush1.msra.mxu0 0.0
    %193 = vmatprep.subr.mxu0 0.0
    %194 = vmatpush1.msra.mxu0 0.0
    %195 = vmatprep.subr.mxu0 0.0
    %196 = vmatpush1.msra.mxu0 0.0
    %197 = vmatprep.subr.mxu0 0.0
    %198 = vmatpush1.msra.mxu0 0.0
    %199 = vmatprep.subr.mxu0 0.0
    %200 = vmatpush1.msra.mxu0 0.0
    %201 = vmatprep.subr.mxu0 0.0
    %202 = vmatpush1.msra.mxu0 0.0
    %203 = vmatprep.subr.mxu0 0.0
    %204 = vmatpush1.msra.mxu0 0.0
    %205 = vmatprep.subr.mxu0 0.0
    %206 = vmatpush1.msra.mxu0 0.0
    %207 = vmatprep.subr.mxu0 0.0
    %208 = vmatpush1.msra.mxu0 0.0
    %209 = vmatprep.subr.mxu0 0.0
    %210 = vmatpush1.msra.mxu0 0.0
    %211 = vmatprep.subr.mxu0 0.0
    %212 = vmatpush1.msra.mxu0 0.0
    %213 = vmatprep.subr.mxu0 0.0
    %214 = vmatpush1.msra.mxu0 0.0
    %215 = vmatprep.subr.mxu0 0.0
    %216 = vmatpush1.msra.mxu0 0.0
    %217 = vmatprep.subr.mxu0 0.0
    %218 = vmatpush1.msra.mxu0 0.0
    %219 = vmatprep.subr.mxu0 0.0
    %220 = vmatpush1.msra.mxu0 0.0
    %221 = vmatprep.mubr.f32.mxu0 0.0
    %222 = vmatmul.mubr.f32.gmra.mrb[0].mxu0 %v155
    %v223 = vpop.f32.mrb[0].mxu0
    %v224 = vadd.f32 0.0, %v223
    %v225 = vpop.f32.mrb[0].mxu0
    %226 = vdwg.mxu0
    %v227 = vld [vmem:[#allocation5] sm:$0xf]
    %v228 = vld [vmem:[%s3] sm:$0xf]
    %230 = vrot.lane.b32.xlu0 %v227, 32
    %v231 = vpop.permute.xlu0 %230
    %vm233 = vcmask 261120
    %v234 = vsel %vm233, %v224, %v231
    %v235 = vld [vmem:[%s5] sm:$0xff]
    %v236 = vld [vmem:[%s5 + $0x8] sm:$0xff]
    %v237 = vld [vmem:[%s5 + $0x10] sm:$0xff]
    %v238 = vld [vmem:[%s5 + $0x18] sm:$0xff]
    %v239 = vld [vmem:[%s5 + $0x20] sm:$0xff]
    %v240 = vld [vmem:[%s5 + $0x28] sm:$0xff]
    %v241 = vld [vmem:[%s5 + $0x30] sm:$0xff]
    %v242 = vld [vmem:[%s5 + $0x38] sm:$0xff]
    %v243 = vld [vmem:[#allocation7] sm:$0x1]
    %v245 = vlaneseq
    %v246 = vshrl.u32 %v245, 7
    %v247 = vsub.s32 0, %v246
    %v248 = vrot.slane %v243, %v247
    %vm250 = vcmask 523264
    %v252 = vsel %vm250, %v234, 0
    %254 = vmatprep.subr.mxu0 0.0
    %255 = vmatpush1.msra.mxu0 %v235
    %256 = vmatprep.subr.mxu0 0.0
    %257 = vmatpush1.msra.mxu0 %v236
    %258 = vmatprep.subr.mxu0 0.0
    %259 = vmatpush1.msra.mxu0 %v237
    %260 = vmatprep.subr.mxu0 0.0
    %261 = vmatpush1.msra.mxu0 %v238
    %262 = vmatprep.subr.mxu0 0.0
    %263 = vmatpush1.msra.mxu0 %v239
    %264 = vmatprep.subr.mxu0 0.0
    %265 = vmatpush1.msra.mxu0 %v240
    %266 = vmatprep.subr.mxu0 0.0
    %267 = vmatpush1.msra.mxu0 %v241
    %268 = vmatprep.subr.mxu0 0.0
    %269 = vmatpush1.msra.mxu0 %v242
    %270 = vmatprep.subr.mxu0 0.0
    %271 = vmatpush1.msra.mxu0 0.0
    %272 = vmatprep.subr.mxu0 0.0
    %273 = vmatpush1.msra.mxu0 0.0
    %274 = vmatprep.subr.mxu0 0.0
    %275 = vmatpush1.msra.mxu0 0.0
    %276 = vmatprep.subr.mxu0 0.0
    %277 = vmatpush1.msra.mxu0 0.0
    %278 = vmatprep.subr.mxu0 0.0
    %279 = vmatpush1.msra.mxu0 0.0
    %280 = vmatprep.subr.mxu0 0.0
    %281 = vmatpush1.msra.mxu0 0.0
    %282 = vmatprep.subr.mxu0 0.0
    %283 = vmatpush1.msra.mxu0 0.0
    %284 = vmatprep.subr.mxu0 0.0
    %285 = vmatpush1.msra.mxu0 0.0
    %286 = vmatprep.subr.mxu0 0.0
    %287 = vmatpush1.msra.mxu0 0.0
    %288 = vmatprep.subr.mxu0 0.0
    %289 = vmatpush1.msra.mxu0 0.0
    %290 = vmatprep.subr.mxu0 0.0
    %291 = vmatpush1.msra.mxu0 0.0
    %292 = vmatprep.subr.mxu0 0.0
    %293 = vmatpush1.msra.mxu0 0.0
    %294 = vmatprep.subr.mxu0 0.0
    %295 = vmatpush1.msra.mxu0 0.0
    %296 = vmatprep.subr.mxu0 0.0
    %297 = vmatpush1.msra.mxu0 0.0
    %298 = vmatprep.subr.mxu0 0.0
    %299 = vmatpush1.msra.mxu0 0.0
    %300 = vmatprep.subr.mxu0 0.0
    %301 = vmatpush1.msra.mxu0 0.0
    %302 = vmatprep.subr.mxu0 0.0
    %303 = vmatpush1.msra.mxu0 0.0
    %304 = vmatprep.subr.mxu0 0.0
    %305 = vmatpush1.msra.mxu0 0.0
    %306 = vmatprep.subr.mxu0 0.0
    %307 = vmatpush1.msra.mxu0 0.0
    %308 = vmatprep.subr.mxu0 0.0
    %309 = vmatpush1.msra.mxu0 0.0
    %310 = vmatprep.subr.mxu0 0.0
    %311 = vmatpush1.msra.mxu0 0.0
    %312 = vmatprep.subr.mxu0 0.0
    %313 = vmatpush1.msra.mxu0 0.0
    %314 = vmatprep.subr.mxu0 0.0
    %315 = vmatpush1.msra.mxu0 0.0
    %316 = vmatprep.subr.mxu0 0.0
    %317 = vmatpush1.msra.mxu0 0.0
    %318 = vmatprep.mubr.f32.mxu0 0.0
    %319 = vmatmul.mubr.f32.gmra.mrb[0].mxu0 %v252
    %v320 = vpop.f32.mrb[0].mxu0
    %v321 = vadd.f32 %v248, %v320
    %v322 = vpop.f32.mrb[0].mxu0
    %323 = vdwg.mxu0
    %v324 = vxor.u32 %v321, 2147483648
    %v325 = vmul.f32 %v324, 1.442695
    %v326 = vpow.pop %v325
    %v327 = vadd.f32 %v326, 1.0
    %v328 = vrcp.pop %v327
    %v329 = vmul.f32 1.0, %v328
    %v330 = vtanh.pop %v321
    %332 = vrot.lane.b32.xlu0 %v228, 32
    %v333 = vpop.permute.xlu0 %332
    %v335 = vmul.f32 %v329, %v333
    %337 = vrot.lane.b32.xlu0 %v330, 64
    %v338 = vpop.permute.xlu0 %337
    %v340 = vmul.f32 %v329, %v338
    %342 = vrot.lane.b32.xlu0 %v340, 32
    %v343 = vpop.permute.xlu0 %342
    %v345 = vadd.f32 %v335, %v343
    %v346 = vtanh.pop %v345
    %348 = vrot.lane.b32.xlu0 %v346, 64
    %v349 = vpop.permute.xlu0 %348
    %v351 = vmul.f32 %v329, %v349
    %353 = vrot.lane.b32.xlu0 %v351, 32
    %v354 = vpop.permute.xlu0 %353
    %vm356 = vcmask 257024
    %357 = vst.msk [vmem:[#allocation15] sm:$0xf] %vm356, %v354
    %359 = vrot.lane.b32.xlu0 %v345, 96
    %v360 = vpop.permute.xlu0 %359
    %362 = vst.msk [vmem:[#allocation17] sm:$0xf] %vm356, %v360
    %s363 = scalar_lea.vmem [#allocation5], 4
    %v364 = vld [vmem:[%s363] sm:$0xf]
    %s365 = scalar_lea.vmem %s3, 4
    %v366 = vld [vmem:[%s365] sm:$0xf]
    %368 = vrot.lane.b32.xlu0 %v364, 32
    %v369 = vpop.permute.xlu0 %368
    %v371 = vsel %vm233, %v354, %v369
    %v372 = vld [vmem:[%s7] sm:$0xff]
    %v373 = vld [vmem:[%s7 + $0x8] sm:$0xff]
    %v374 = vld [vmem:[%s7 + $0x10] sm:$0xff]
    %v375 = vld [vmem:[%s7 + $0x18] sm:$0xff]
    %v376 = vld [vmem:[%s7 + $0x20] sm:$0xff]
    %v377 = vld [vmem:[%s7 + $0x28] sm:$0xff]
    %v378 = vld [vmem:[%s7 + $0x30] sm:$0xff]
    %v379 = vld [vmem:[%s7 + $0x38] sm:$0xff]
    %v380 = vld [vmem:[#allocation8] sm:$0x1]
    %v382 = vlaneseq
    %v383 = vshrl.u32 %v382, 7
    %v384 = vsub.s32 0, %v383
    %v385 = vrot.slane %v380, %v384
    %v388 = vsel %vm250, %v371, 0
    %390 = vmatprep.subr.mxu0 0.0
    %391 = vmatpush1.msra.mxu0 %v372
    %392 = vmatprep.subr.mxu0 0.0
    %393 = vmatpush1.msra.mxu0 %v373
    %394 = vmatprep.subr.mxu0 0.0
    %395 = vmatpush1.msra.mxu0 %v374
    %396 = vmatprep.subr.mxu0 0.0
    %397 = vmatpush1.msra.mxu0 %v375
    %398 = vmatprep.subr.mxu0 0.0
    %399 = vmatpush1.msra.mxu0 %v376
    %400 = vmatprep.subr.mxu0 0.0
    %401 = vmatpush1.msra.mxu0 %v377
    %402 = vmatprep.subr.mxu0 0.0
    %403 = vmatpush1.msra.mxu0 %v378
    %404 = vmatprep.subr.mxu0 0.0
    %405 = vmatpush1.msra.mxu0 %v379
    %406 = vmatprep.subr.mxu0 0.0
    %407 = vmatpush1.msra.mxu0 0.0
    %408 = vmatprep.subr.mxu0 0.0
    %409 = vmatpush1.msra.mxu0 0.0
    %410 = vmatprep.subr.mxu0 0.0
    %411 = vmatpush1.msra.mxu0 0.0
    %412 = vmatprep.subr.mxu0 0.0
    %413 = vmatpush1.msra.mxu0 0.0
    %414 = vmatprep.subr.mxu0 0.0
    %415 = vmatpush1.msra.mxu0 0.0
    %416 = vmatprep.subr.mxu0 0.0
    %417 = vmatpush1.msra.mxu0 0.0
    %418 = vmatprep.subr.mxu0 0.0
    %419 = vmatpush1.msra.mxu0 0.0
    %420 = vmatprep.subr.mxu0 0.0
    %421 = vmatpush1.msra.mxu0 0.0
    %422 = vmatprep.subr.mxu0 0.0
    %423 = vmatpush1.msra.mxu0 0.0
    %424 = vmatprep.subr.mxu0 0.0
    %425 = vmatpush1.msra.mxu0 0.0
    %426 = vmatprep.subr.mxu0 0.0
    %427 = vmatpush1.msra.mxu0 0.0
    %428 = vmatprep.subr.mxu0 0.0
    %429 = vmatpush1.msra.mxu0 0.0
    %430 = vmatprep.subr.mxu0 0.0
    %431 = vmatpush1.msra.mxu0 0.0
    %432 = vmatprep.subr.mxu0 0.0
    %433 = vmatpush1.msra.mxu0 0.0
    %434 = vmatprep.subr.mxu0 0.0
    %435 = vmatpush1.msra.mxu0 0.0
    %436 = vmatprep.subr.mxu0 0.0
    %437 = vmatpush1.msra.mxu0 0.0
    %438 = vmatprep.subr.mxu0 0.0
    %439 = vmatpush1.msra.mxu0 0.0
    %440 = vmatprep.subr.mxu0 0.0
    %441 = vmatpush1.msra.mxu0 0.0
    %442 = vmatprep.subr.mxu0 0.0
    %443 = vmatpush1.msra.mxu0 0.0
    %444 = vmatprep.subr.mxu0 0.0
    %445 = vmatpush1.msra.mxu0 0.0
    %446 = vmatprep.subr.mxu0 0.0
    %447 = vmatpush1.msra.mxu0 0.0
    %448 = vmatprep.subr.mxu0 0.0
    %449 = vmatpush1.msra.mxu0 0.0
    %450 = vmatprep.subr.mxu0 0.0
    %451 = vmatpush1.msra.mxu0 0.0
    %452 = vmatprep.subr.mxu0 0.0
    %453 = vmatpush1.msra.mxu0 0.0
    %454 = vmatprep.mubr.f32.mxu0 0.0
    %455 = vmatmul.mubr.f32.gmra.mrb[0].mxu0 %v388
    %v456 = vpop.f32.mrb[0].mxu0
    %v457 = vadd.f32 %v385, %v456
    %v458 = vpop.f32.mrb[0].mxu0
    %459 = vdwg.mxu0
    %v460 = vxor.u32 %v457, 2147483648
    %v461 = vmul.f32 %v460, 1.442695
    %v462 = vpow.pop %v461
    %v463 = vadd.f32 %v462, 1.0
    %v464 = vrcp.pop %v463
    %v465 = vmul.f32 1.0, %v464
    %v466 = vtanh.pop %v457
    %468 = vrot.lane.b32.xlu0 %v366, 32
    %v469 = vpop.permute.xlu0 %468
    %v471 = vmul.f32 %v465, %v469
    %473 = vrot.lane.b32.xlu0 %v466, 64
    %v474 = vpop.permute.xlu0 %473
    %v476 = vmul.f32 %v465, %v474
    %478 = vrot.lane.b32.xlu0 %v476, 32
    %v479 = vpop.permute.xlu0 %478
    %v481 = vadd.f32 %v471, %v479
    %v482 = vtanh.pop %v481
    %484 = vrot.lane.b32.xlu0 %v482, 64
    %v485 = vpop.permute.xlu0 %484
    %v487 = vmul.f32 %v465, %v485
    %489 = vrot.lane.b32.xlu0 %v487, 32
    %v490 = vpop.permute.xlu0 %489
    %s492 = scalar_lea.vmem [#allocation15], 4
    %493 = vst.msk [vmem:[%s492] sm:$0xf] %vm356, %v490
    %495 = vrot.lane.b32.xlu0 %v481, 96
    %v496 = vpop.permute.xlu0 %495
    %s498 = scalar_lea.vmem [#allocation17], 4
    %499 = vst.msk [vmem:[%s498] sm:$0xf] %vm356, %v496
    %v500 = vld [vmem:[%s4] sm:$0xff]
    %v501 = vld [vmem:[%s4 + $0x8] sm:$0xff]
    %v502 = vld [vmem:[%s4 + $0x10] sm:$0xff]
    %v503 = vld [vmem:[%s4 + $0x18] sm:$0xff]
    %v504 = vld [vmem:[#allocation10] sm:$0xff]
    %v505 = vld [vmem:[#allocation10 + $0x8] sm:$0xff]
    %v506 = vld [vmem:[#allocation10 + $0x10] sm:$0xff]
    %v507 = vld [vmem:[#allocation10 + $0x18] sm:$0xff]
    %v508 = vld [vmem:[#allocation11] sm:$0x1]
    %v510 = vlaneseq
    %v511 = vshrl.u32 %v510, 7
    %v512 = vsub.s32 0, %v511
    %v513 = vrot.slane %v508, %v512
    %v516 = vsel %vm233, %v500, 0
    %v519 = vsel %vm233, %v501, 0
    %v522 = vsel %vm233, %v502, 0
    %v525 = vsel %vm233, %v503, 0
    %527 = vmatprep.subr.mxu0 0.0
    %528 = vmatpush1.msra.mxu0 %v504
    %529 = vmatprep.subr.mxu0 0.0
    %530 = vmatpush1.msra.mxu0 %v505
    %531 = vmatprep.subr.mxu0 0.0
    %532 = vmatpush1.msra.mxu0 %v506
    %533 = vmatprep.subr.mxu0 0.0
    %534 = vmatpush1.msra.mxu0 %v507
    %535 = vmatprep.subr.mxu0 0.0
    %536 = vmatpush1.msra.mxu0 0.0
    %537 = vmatprep.subr.mxu0 0.0
    %538 = vmatpush1.msra.mxu0 0.0
    %539 = vmatprep.subr.mxu0 0.0
    %540 = vmatpush1.msra.mxu0 0.0
    %541 = vmatprep.subr.mxu0 0.0
    %542 = vmatpush1.msra.mxu0 0.0
    %543 = vmatprep.subr.mxu0 0.0
    %544 = vmatpush1.msra.mxu0 0.0
    %545 = vmatprep.subr.mxu0 0.0
    %546 = vmatpush1.msra.mxu0 0.0
    %547 = vmatprep.subr.mxu0 0.0
    %548 = vmatpush1.msra.mxu0 0.0
    %549 = vmatprep.subr.mxu0 0.0
    %550 = vmatpush1.msra.mxu0 0.0
    %551 = vmatprep.subr.mxu0 0.0
    %552 = vmatpush1.msra.mxu0 0.0
    %553 = vmatprep.subr.mxu0 0.0
    %554 = vmatpush1.msra.mxu0 0.0
    %555 = vmatprep.subr.mxu0 0.0
    %556 = vmatpush1.msra.mxu0 0.0
    %557 = vmatprep.subr.mxu0 0.0
    %558 = vmatpush1.msra.mxu0 0.0
    %559 = vmatprep.subr.mxu0 0.0
    %560 = vmatpush1.msra.mxu0 0.0
    %561 = vmatprep.subr.mxu0 0.0
    %562 = vmatpush1.msra.mxu0 0.0
    %563 = vmatprep.subr.mxu0 0.0
    %564 = vmatpush1.msra.mxu0 0.0
    %565 = vmatprep.subr.mxu0 0.0
    %566 = vmatpush1.msra.mxu0 0.0
    %567 = vmatprep.subr.mxu0 0.0
    %568 = vmatpush1.msra.mxu0 0.0
    %569 = vmatprep.subr.mxu0 0.0
    %570 = vmatpush1.msra.mxu0 0.0
    %571 = vmatprep.subr.mxu0 0.0
    %572 = vmatpush1.msra.mxu0 0.0
    %573 = vmatprep.subr.mxu0 0.0
    %574 = vmatpush1.msra.mxu0 0.0
    %575 = vmatprep.subr.mxu0 0.0
    %576 = vmatpush1.msra.mxu0 0.0
    %577 = vmatprep.subr.mxu0 0.0
    %578 = vmatpush1.msra.mxu0 0.0
    %579 = vmatprep.subr.mxu0 0.0
    %580 = vmatpush1.msra.mxu0 0.0
    %581 = vmatprep.subr.mxu0 0.0
    %582 = vmatpush1.msra.mxu0 0.0
    %583 = vmatprep.subr.mxu0 0.0
    %584 = vmatpush1.msra.mxu0 0.0
    %585 = vmatprep.subr.mxu0 0.0
    %586 = vmatpush1.msra.mxu0 0.0
    %587 = vmatprep.subr.mxu0 0.0
    %588 = vmatpush1.msra.mxu0 0.0
    %589 = vmatprep.subr.mxu0 0.0
    %590 = vmatpush1.msra.mxu0 0.0
    %591 = vmatprep.mubr.f32.mxu0 0.0
    %592 = vmatmul.mubr.f32.gmra.mrb[0].mxu0 %v516
    %v593 = vpop.f32.mrb[0].mxu0
    %v594 = vadd.f32 %v513, %v593
    %v595 = vpop.f32.mrb[0].mxu0
    %596 = vmatprep.mubr.f32.mxu0 0.0
    %597 = vmatmul.mubr.f32.gmra.mrb[0].mxu0 %v519
    %v598 = vpop.f32.mrb[0].mxu0
    %v599 = vadd.f32 %v513, %v598
    %v600 = vpop.f32.mrb[0].mxu0
    %601 = vmatprep.mubr.f32.mxu0 0.0
    %602 = vmatmul.mubr.f32.gmra.mrb[0].mxu0 %v522
    %v603 = vpop.f32.mrb[0].mxu0
    %v604 = vadd.f32 %v513, %v603
    %v605 = vpop.f32.mrb[0].mxu0
    %606 = vmatprep.mubr.f32.mxu0 0.0
    %607 = vmatmul.mubr.f32.gmra.mrb[0].mxu0 %v525
    %v608 = vpop.f32.mrb[0].mxu0
    %v609 = vadd.f32 %v513, %v608
    %v610 = vpop.f32.mrb[0].mxu0
    %611 = vdwg.mxu0
    %v613 = vunpack.c.l.s4 1966171168
    %v614 = vunpack.c.0.s8 %v613
    %v615 = vlaneseq
    %v616 = vshrl.u32 %v615, 7
    %v617 = vsub.s32 %v614, %v616
    %v618 = vrot.slane %v487, %v617
    %v619 = vcombine.high %v618, %v618
    %v621 = vunpack.c.l.s4 1966171168
    %v622 = vunpack.c.0.s8 %v621
    %v623 = vlaneseq
    %v624 = vshrl.u32 %v623, 7
    %v625 = vsub.s32 %v622, %v624
    %v626 = vrot.slane %v618, %v625
    %v628 = vunpack.c.l.s4 1966171168
    %v629 = vunpack.c.0.s8 %v628
    %v630 = vlaneseq
    %v631 = vshrl.u32 %v630, 7
    %v632 = vsub.s32 %v629, %v631
    %v633 = vrot.slane %v619, %v632
    %v634 = vcombine.high %v626, %v626
    %v635 = vcombine.high %v633, %v633
    %v636 = vlaneseq
    %v637 = vshrl.u32 %v636, 7
    %v638 = vsub.s32 0, %v637
    %v639 = vrot.slane %v626, %v638
    %v640 = vlaneseq
    %v641 = vshrl.u32 %v640, 7
    %v642 = vsub.s32 0, %v641
    %v643 = vrot.slane %v633, %v642
    %v644 = vlaneseq
    %v645 = vshrl.u32 %v644, 7
    %v646 = vsub.s32 0, %v645
    %v647 = vrot.slane %v634, %v646
    %v648 = vlaneseq
    %v649 = vshrl.u32 %v648, 7
    %v650 = vsub.s32 0, %v649
    %v651 = vrot.slane %v635, %v650
    %652 = vrot.lane.b32.xlu0 %v639, 32
    %v653 = vpop.permute.xlu0 %652
    %654 = vrot.lane.b32.xlu0 %v643, 32
    %v655 = vpop.permute.xlu0 %654
    %656 = vrot.lane.b32.xlu0 %v647, 32
    %v657 = vpop.permute.xlu0 %656
    %658 = vrot.lane.b32.xlu0 %v651, 32
    %v659 = vpop.permute.xlu0 %658
    %v664 = vmul.f32 %v594, %v653
    %v665 = vmul.f32 %v599, %v655
    %v666 = vmul.f32 %v604, %v657
    %v667 = vmul.f32 %v609, %v659
    %v668 = vsel %vm233, %v664, 0.0
    %669 = vadd.xlane.f32.xlu0 %v668
    %v670 = vpop.xlane.xlu0 %669
    %v671 = vsel %vm233, %v665, 0.0
    %672 = vadd.xlane.f32.xlu0 %v671
    %v673 = vpop.xlane.xlu0 %672
    %v674 = vsel %vm233, %v666, 0.0
    %675 = vadd.xlane.f32.xlu0 %v674
    %v676 = vpop.xlane.xlu0 %675
    %v677 = vsel %vm233, %v667, 0.0
    %678 = vadd.xlane.f32.xlu0 %v677
    %v679 = vpop.xlane.xlu0 %678
    %v684 = vlaneseq
    %v685 = vshrl.u32 %v684, 7
    %v686 = vsub.s32 %v144, %v685
    %v687 = vrot.slane %v670, %v686
    %v688 = vlaneseq
    %v689 = vshrl.u32 %v688, 7
    %v690 = vsub.s32 %v144, %v689
    %v691 = vrot.slane %v673, %v690
    %v692 = vlaneseq
    %v693 = vshrl.u32 %v692, 7
    %v694 = vsub.s32 %v144, %v693
    %v695 = vrot.slane %v676, %v694
    %v696 = vlaneseq
    %v697 = vshrl.u32 %v696, 7
    %v698 = vsub.s32 %v144, %v697
    %v699 = vrot.slane %v679, %v698
    %vm700 = vcmask 1041409
    %v701 = vsel %vm700, %v691, %v687
    %vm702 = vcmask 1042434
    %v703 = vsel %vm702, %v695, %v701
    %vm704 = vcmask 1043459
    %v705 = vsel %vm704, %v699, %v703
    %vm707 = vcmask 60416
    %v708 = vsel %vm707, %v705, -inf
    %709 = vmax.xlane.f32.xlu0 %v708
    %v710 = vpop.xlane.xlu0 %709
    %v712 = vlaneseq
    %v713 = vshrl.u32 %v712, 7
    %v714 = vsub.s32 0, %v713
    %v715 = vrot.slane %v710, %v714
    %v716 = vlaneseq
    %v717 = vshrl.u32 %v716, 7
    %v718 = vsub.s32 1, %v717
    %v719 = vrot.slane %v710, %v718
    %v720 = vlaneseq
    %v721 = vshrl.u32 %v720, 7
    %v722 = vsub.s32 2, %v721
    %v723 = vrot.slane %v710, %v722
    %v724 = vlaneseq
    %v725 = vshrl.u32 %v724, 7
    %v726 = vsub.s32 3, %v725
    %v727 = vrot.slane %v710, %v726
    %v732 = vsub.f32 %v670, %v715
    %v733 = vsub.f32 %v673, %v719
    %v734 = vsub.f32 %v676, %v723
    %v735 = vsub.f32 %v679, %v727
    %v736 = vmul.f32 %v732, 1.442695
    %v737 = vpow.pop %v736
    %v738 = vmul.f32 %v733, 1.442695
    %v739 = vpow.pop %v738
    %v740 = vmul.f32 %v734, 1.442695
    %v741 = vpow.pop %v740
    %v742 = vmul.f32 %v735, 1.442695
    %v743 = vpow.pop %v742
    %748 = vset.pattern.permute.xlu0 0
    %749 = vperm.xlu0 %748, %v737
    %v750 = vpop.permute.xlu0 %749
    %751 = vset.pattern.permute.xlu0 0
    %752 = vperm.xlu0 %751, %v739
    %v753 = vpop.permute.xlu0 %752
    %754 = vset.pattern.permute.xlu0 0
    %755 = vperm.xlu0 %754, %v741
    %v756 = vpop.permute.xlu0 %755
    %757 = vset.pattern.permute.xlu0 0
    %758 = vperm.xlu0 %757, %v743
    %v759 = vpop.permute.xlu0 %758
    %v760 = vlaneseq
    %v761 = vshrl.u32 %v760, 7
    %v762 = vsub.s32 %v144, %v761
    %v763 = vrot.slane %v750, %v762
    %v764 = vlaneseq
    %v765 = vshrl.u32 %v764, 7
    %v766 = vsub.s32 %v144, %v765
    %v767 = vrot.slane %v753, %v766
    %v768 = vlaneseq
    %v769 = vshrl.u32 %v768, 7
    %v770 = vsub.s32 %v144, %v769
    %v771 = vrot.slane %v756, %v770
    %v772 = vlaneseq
    %v773 = vshrl.u32 %v772, 7
    %v774 = vsub.s32 %v144, %v773
    %v775 = vrot.slane %v759, %v774
    %v776 = vsel %vm700, %v767, %v763
    %v777 = vsel %vm702, %v771, %v776
    %v778 = vsel %vm704, %v775, %v777
    %v780 = vsel %vm707, %v778, 0.0
    %781 = vadd.xlane.f32.xlu0 %v780
    %v782 = vpop.xlane.xlu0 %781
    %v784 = vlaneseq
    %v785 = vshrl.u32 %v784, 7
    %v786 = vsub.s32 0, %v785
    %v787 = vrot.slane %v782, %v786
    %v788 = vlaneseq
    %v789 = vshrl.u32 %v788, 7
    %v790 = vsub.s32 1, %v789
    %v791 = vrot.slane %v782, %v790
    %v792 = vlaneseq
    %v793 = vshrl.u32 %v792, 7
    %v794 = vsub.s32 2, %v793
    %v795 = vrot.slane %v782, %v794
    %v796 = vlaneseq
    %v797 = vshrl.u32 %v796, 7
    %v798 = vsub.s32 3, %v797
    %v799 = vrot.slane %v782, %v798
    %v804 = vrcp.pop %v787
    %v805 = vmul.f32 %v737, %v804
    %v806 = vrcp.pop %v791
    %v807 = vmul.f32 %v739, %v806
    %v808 = vrcp.pop %v795
    %v809 = vmul.f32 %v741, %v808
    %v810 = vrcp.pop %v799
    %v811 = vmul.f32 %v743, %v810
    %813 = vset.pattern.permute.xlu0 0
    %814 = vperm.xlu0 %813, %v805
    %v815 = vpop.permute.xlu0 %814
    %818 = vset.pattern.permute.xlu0 0
    %819 = vperm.xlu0 %818, %v807
    %v820 = vpop.permute.xlu0 %819
    %823 = vset.pattern.permute.xlu0 0
    %824 = vperm.xlu0 %823, %v809
    %v825 = vpop.permute.xlu0 %824
    %828 = vset.pattern.permute.xlu0 0
    %829 = vperm.xlu0 %828, %v811
    %v830 = vpop.permute.xlu0 %829
    %v832 = vmul.f32 %v815, %v500
    %v833 = vmul.f32 %v820, %v501
    %v834 = vmul.f32 %v825, %v502
    %v835 = vmul.f32 %v830, %v503
    %v836 = vsel %vm233, %v832, 0.0
    %v837 = vrot.slane %v836, 4
    %v838 = vadd.f32 %v836, %v837
    %v839 = vrot.slane %v838, 2
    %v840 = vadd.f32 %v838, %v839
    %v841 = vrot.slane %v840, 1
    %v842 = vadd.f32 %v840, %v841
    %v843 = vsel %vm233, %v833, 0.0
    %v844 = vrot.slane %v843, 4
    %v845 = vadd.f32 %v843, %v844
    %v846 = vrot.slane %v845, 2
    %v847 = vadd.f32 %v845, %v846
    %v848 = vrot.slane %v847, 1
    %v849 = vadd.f32 %v847, %v848
    %v850 = vsel %vm233, %v834, 0.0
    %v851 = vrot.slane %v850, 4
    %v852 = vadd.f32 %v850, %v851
    %v853 = vrot.slane %v852, 2
    %v854 = vadd.f32 %v852, %v853
    %v855 = vrot.slane %v854, 1
    %v856 = vadd.f32 %v854, %v855
    %v857 = vsel %vm233, %v835, 0.0
    %v858 = vrot.slane %v857, 4
    %v859 = vadd.f32 %v857, %v858
    %v860 = vrot.slane %v859, 2
    %v861 = vadd.f32 %v859, %v860
    %v862 = vrot.slane %v861, 1
    %v863 = vadd.f32 %v861, %v862
    %v868 = vsel %vm700, %v849, %v842
    %v869 = vsel %vm702, %v856, %v868
    %v870 = vsel %vm704, %v863, %v869
    %871 = vrot.lane.b32.xlu0 %v870, 32
    %v872 = vpop.permute.xlu0 %871
    %v874 = vsel %vm233, %v490, %v872
    %v875 = vld [vmem:[%s11] sm:$0xff]
    %v876 = vld [vmem:[%s11 + $0x8] sm:$0xff]
    %v877 = vld [vmem:[%s11 + $0x10] sm:$0xff]
    %v878 = vld [vmem:[%s11 + $0x18] sm:$0xff]
    %v879 = vld [vmem:[%s11 + $0x20] sm:$0xff]
    %v880 = vld [vmem:[%s11 + $0x28] sm:$0xff]
    %v881 = vld [vmem:[%s11 + $0x30] sm:$0xff]
    %v882 = vld [vmem:[%s11 + $0x38] sm:$0xff]
    %v883 = vld [vmem:[%s12] sm:$0x1]
    %v885 = vlaneseq
    %v886 = vshrl.u32 %v885, 7
    %v887 = vsub.s32 0, %v886
    %v888 = vrot.slane %v883, %v887
    %v891 = vsel %vm250, %v874, 0
    %893 = vmatprep.subr.mxu0 0.0
    %894 = vmatpush1.msra.mxu0 %v875
    %895 = vmatprep.subr.mxu0 0.0
    %896 = vmatpush1.msra.mxu0 %v876
    %897 = vmatprep.subr.mxu0 0.0
    %898 = vmatpush1.msra.mxu0 %v877
    %899 = vmatprep.subr.mxu0 0.0
    %900 = vmatpush1.msra.mxu0 %v878
    %901 = vmatprep.subr.mxu0 0.0
    %902 = vmatpush1.msra.mxu0 %v879
    %903 = vmatprep.subr.mxu0 0.0
    %904 = vmatpush1.msra.mxu0 %v880
    %905 = vmatprep.subr.mxu0 0.0
    %906 = vmatpush1.msra.mxu0 %v881
    %907 = vmatprep.subr.mxu0 0.0
    %908 = vmatpush1.msra.mxu0 %v882
    %909 = vmatprep.subr.mxu0 0.0
    %910 = vmatpush1.msra.mxu0 0.0
    %911 = vmatprep.subr.mxu0 0.0
    %912 = vmatpush1.msra.mxu0 0.0
    %913 = vmatprep.subr.mxu0 0.0
    %914 = vmatpush1.msra.mxu0 0.0
    %915 = vmatprep.subr.mxu0 0.0
    %916 = vmatpush1.msra.mxu0 0.0
    %917 = vmatprep.subr.mxu0 0.0
    %918 = vmatpush1.msra.mxu0 0.0
    %919 = vmatprep.subr.mxu0 0.0
    %920 = vmatpush1.msra.mxu0 0.0
    %921 = vmatprep.subr.mxu0 0.0
    %922 = vmatpush1.msra.mxu0 0.0
    %923 = vmatprep.subr.mxu0 0.0
    %924 = vmatpush1.msra.mxu0 0.0
    %925 = vmatprep.subr.mxu0 0.0
    %926 = vmatpush1.msra.mxu0 0.0
    %927 = vmatprep.subr.mxu0 0.0
    %928 = vmatpush1.msra.mxu0 0.0
    %929 = vmatprep.subr.mxu0 0.0
    %930 = vmatpush1.msra.mxu0 0.0
    %931 = vmatprep.subr.mxu0 0.0
    %932 = vmatpush1.msra.mxu0 0.0
    %933 = vmatprep.subr.mxu0 0.0
    %934 = vmatpush1.msra.mxu0 0.0
    %935 = vmatprep.subr.mxu0 0.0
    %936 = vmatpush1.msra.mxu0 0.0
    %937 = vmatprep.subr.mxu0 0.0
    %938 = vmatpush1.msra.mxu0 0.0
    %939 = vmatprep.subr.mxu0 0.0
    %940 = vmatpush1.msra.mxu0 0.0
    %941 = vmatprep.subr.mxu0 0.0
    %942 = vmatpush1.msra.mxu0 0.0
    %943 = vmatprep.subr.mxu0 0.0
    %944 = vmatpush1.msra.mxu0 0.0
    %945 = vmatprep.subr.mxu0 0.0
    %946 = vmatpush1.msra.mxu0 0.0
    %947 = vmatprep.subr.mxu0 0.0
    %948 = vmatpush1.msra.mxu0 0.0
    %949 = vmatprep.subr.mxu0 0.0
    %950 = vmatpush1.msra.mxu0 0.0
    %951 = vmatprep.subr.mxu0 0.0
    %952 = vmatpush1.msra.mxu0 0.0
    %953 = vmatprep.subr.mxu0 0.0
    %954 = vmatpush1.msra.mxu0 0.0
    %955 = vmatprep.subr.mxu0 0.0
    %956 = vmatpush1.msra.mxu0 0.0
    %957 = vmatprep.mubr.f32.mxu0 0.0
    %958 = vmatmul.mubr.f32.gmra.mrb[0].mxu0 %v891
    %v959 = vpop.f32.mrb[0].mxu0
    %v960 = vadd.f32 %v888, %v959
    %v961 = vpop.f32.mrb[0].mxu0
    %962 = vdwg.mxu0
    %v963 = vtanh.pop %v960
    %v964 = vld [vmem:[%s13] sm:$0xff]
    %v965 = vld [vmem:[%s13 + $0x8] sm:$0xff]
    %v966 = vld [vmem:[%s13 + $0x10] sm:$0xff]
    %v967 = vld [vmem:[%s13 + $0x18] sm:$0xff]
    %v968 = vld [vmem:[#allocation13] sm:$0x1]
    %v970 = vlaneseq
    %v971 = vshrl.u32 %v970, 7
    %v972 = vsub.s32 0, %v971
    %v973 = vrot.slane %v968, %v972
    %v976 = vsel %vm233, %v963, 0
    %978 = vmatprep.subr.mxu0 0.0
    %979 = vmatpush1.msra.mxu0 %v964
    %980 = vmatprep.subr.mxu0 0.0
    %981 = vmatpush1.msra.mxu0 %v965
    %982 = vmatprep.subr.mxu0 0.0
    %983 = vmatpush1.msra.mxu0 %v966
    %984 = vmatprep.subr.mxu0 0.0
    %985 = vmatpush1.msra.mxu0 %v967
    %986 = vmatprep.subr.mxu0 0.0
    %987 = vmatpush1.msra.mxu0 0.0
    %988 = vmatprep.subr.mxu0 0.0
    %989 = vmatpush1.msra.mxu0 0.0
    %990 = vmatprep.subr.mxu0 0.0
    %991 = vmatpush1.msra.mxu0 0.0
    %992 = vmatprep.subr.mxu0 0.0
    %993 = vmatpush1.msra.mxu0 0.0
    %994 = vmatprep.subr.mxu0 0.0
    %995 = vmatpush1.msra.mxu0 0.0
    %996 = vmatprep.subr.mxu0 0.0
    %997 = vmatpush1.msra.mxu0 0.0
    %998 = vmatprep.subr.mxu0 0.0
    %999 = vmatpush1.msra.mxu0 0.0
    %1000 = vmatprep.subr.mxu0 0.0
    %1001 = vmatpush1.msra.mxu0 0.0
    %1002 = vmatprep.subr.mxu0 0.0
    %1003 = vmatpush1.msra.mxu0 0.0
    %1004 = vmatprep.subr.mxu0 0.0
    %1005 = vmatpush1.msra.mxu0 0.0
    %1006 = vmatprep.subr.mxu0 0.0
    %1007 = vmatpush1.msra.mxu0 0.0
    %1008 = vmatprep.subr.mxu0 0.0
    %1009 = vmatpush1.msra.mxu0 0.0
    %1010 = vmatprep.subr.mxu0 0.0
    %1011 = vmatpush1.msra.mxu0 0.0
    %1012 = vmatprep.subr.mxu0 0.0
    %1013 = vmatpush1.msra.mxu0 0.0
    %1014 = vmatprep.subr.mxu0 0.0
    %1015 = vmatpush1.msra.mxu0 0.0
    %1016 = vmatprep.subr.mxu0 0.0
    %1017 = vmatpush1.msra.mxu0 0.0
    %1018 = vmatprep.subr.mxu0 0.0
    %1019 = vmatpush1.msra.mxu0 0.0
    %1020 = vmatprep.subr.mxu0 0.0
    %1021 = vmatpush1.msra.mxu0 0.0
    %1022 = vmatprep.subr.mxu0 0.0
    %1023 = vmatpush1.msra.mxu0 0.0
    %1024 = vmatprep.subr.mxu0 0.0
    %1025 = vmatpush1.msra.mxu0 0.0
    %1026 = vmatprep.subr.mxu0 0.0
    %1027 = vmatpush1.msra.mxu0 0.0
    %1028 = vmatprep.subr.mxu0 0.0
    %1029 = vmatpush1.msra.mxu0 0.0
    %1030 = vmatprep.subr.mxu0 0.0
    %1031 = vmatpush1.msra.mxu0 0.0
    %1032 = vmatprep.subr.mxu0 0.0
    %1033 = vmatpush1.msra.mxu0 0.0
    %1034 = vmatprep.subr.mxu0 0.0
    %1035 = vmatpush1.msra.mxu0 0.0
    %1036 = vmatprep.subr.mxu0 0.0
    %1037 = vmatpush1.msra.mxu0 0.0
    %1038 = vmatprep.subr.mxu0 0.0
    %1039 = vmatpush1.msra.mxu0 0.0
    %1040 = vmatprep.subr.mxu0 0.0
    %1041 = vmatpush1.msra.mxu0 0.0
    %1042 = vmatprep.mubr.f32.mxu0 0.0
    %1043 = vmatmul.mubr.f32.gmra.mrb[0].mxu0 %v976
    %v1044 = vpop.f32.mrb[0].mxu0
    %v1045 = vadd.f32 %v973, %v1044
    %v1046 = vpop.f32.mrb[0].mxu0
    %1047 = vdwg.mxu0
    %vm1048 = vcmask 125952
    %1049 = vst.msk [vmem:[#allocation14] sm:$0xf] %vm1048, %v1045
    // Predicated region
    $region90: #{decoder_forward.1} parent=1 // pred_check
      _
    $region91: #{decoder_forward.1} parent=1 // pred_check_branch
      %1051 = sbr.rel (0) target = $region93
    $region92: #{decoder_forward.1} parent=1 // pred_region
      %s1053 = ssub.s32 64, 64
      %1054 = vsyncadd [#allocation4], %s1053
      %s1056 = sshll.u32 [#allocation14], 4
      %s1057 = int_to_ptr.vmem [resolvable:$true] %s1056
      %1059 = dma.vmem_to_hbm [thread:$0]  %s1057, 64, %s15, [#allocation4]
    $region93: #{decoder_forward.1} parent=1 // pred_fallthru
      _
    // Predicated region
    $region94: #{decoder_forward.1} parent=1 // pred_check
      _
    $region95: #{decoder_forward.1} parent=1 // pred_check_branch
      %1061 = sbr.rel (0) target = $region97
    $region96: #{decoder_forward.1} parent=1 // pred_region
      %s1063 = ssub.s32 128, 128
      %1064 = vsyncadd [#allocation16], %s1063
      %s1065 = sshll.u32 [#allocation15], 4
      %s1066 = int_to_ptr.vmem [resolvable:$true] %s1065
      %1071 = dma.vmem_to_hbm [thread:$0]  %s1066, 128, %s16, [#allocation16], 64, 64, 4
    $region97: #{decoder_forward.1} parent=1 // pred_fallthru
      _
    // Predicated region
    $region98: #{decoder_forward.1} parent=1 // pred_check
      _
    $region99: #{decoder_forward.1} parent=1 // pred_check_branch
      %1073 = sbr.rel (0) target = $region101
    $region100: #{decoder_forward.1} parent=1 // pred_region
      %s1075 = ssub.s32 128, 128
      %1076 = vsyncadd [#allocation16], %s1075
      %s1077 = sshll.u32 [#allocation17], 4
      %s1078 = int_to_ptr.vmem [resolvable:$true] %s1077
      %1083 = dma.vmem_to_hbm [thread:$0]  %s1078, 128, %s17, [#allocation16], 64, 64, 4
    $region101: #{decoder_forward.1} parent=1 // pred_fallthru
      _
    // Predicated region
    $region102: #{decoder_forward.1} parent=1 // pred_check
      _
    $region103: #{decoder_forward.1} parent=1 // pred_check_branch
      %1085 = sbr.rel (0) target = $region105
    $region104: #{decoder_forward.1} parent=1 // pred_region
      %1086 = dma.done [#allocation4], 64
    $region105: #{decoder_forward.1} parent=1 // pred_fallthru
      _
    // Predicated region
    $region106: #{decoder_forward.1} parent=1 // pred_check
      _
    $region107: #{decoder_forward.1} parent=1 // pred_check_branch
      %1088 = sbr.rel (0) target = $region109
    $region108: #{decoder_forward.1} parent=1 // pred_region
      %1089 = dma.done [#allocation16], 128
    $region109: #{decoder_forward.1} parent=1 // pred_fallthru
      _
    // Predicated region
    $region110: #{decoder_forward.1} parent=1 // pred_check
      _
    $region111: #{decoder_forward.1} parent=1 // pred_check_branch
      %1091 = sbr.rel (0) target = $region113
    $region112: #{decoder_forward.1} parent=1 // pred_region
      %1092 = dma.done [#allocation16], 128
    $region113: #{decoder_forward.1} parent=1 // pred_fallthru
      _
    %1093 = vsyncpa [#allocation3], 1
    %1094 = vsyncpa [#allocation6], 1
    %1095 = vsyncpa [#allocation9], 1
    %1096 = vsyncpa [#allocation12], 1
    %1097 = vsyncpa [#allocation4], 1
    %1098 = vsyncpa [#allocation16], 1

</llo_original>
